<compile_context>
chip_gen: v7x
topology: tpu7x:2x2x1
jax: 0.10.0
libtpu: 0.0.40
codegen_flags: <defaults>
</compile_context>

<pallas_src>
import functools

import jax
import jax.numpy as jnp
from jax.experimental import pallas as pl
from jax.experimental.pallas import tpu as pltpu


# ---------------- configuration (mirrors the CAE `params` dict) -------------
PARAMS = dict(
    num_ch=1,           # input channels
    num_conv=4,         # dictionary atoms / conv filters
    dictionary_dim=3,   # kernel size
    stride=1,
    split_stride=1,     # identity branch of split_image
    num_layers=3,       # unrolled ISTA iterations
    lam=0.5,
    step=0.1,
    twosided=True,
)


def _cae_kernel(wb_ref, mask_ref, x_ref, xhat_ref, zhat_ref, *,
                TB, F, kd, H, W, num_layers, lam, step, twosided):
    """One batch tile; all ISTA state stays in vector registers between passes.

    wb_ref   : VMEM (kd*kd, F*TB, H*W)  weight planes, lane-broadcast;
               row f*TB+b of plane di*kd+dj holds Wdict[f, 0, di, dj].
    mask_ref : VMEM (F*TB, H*W)  1.0 on the valid code region (i<Hz, j<Wz).
    x_ref    : VMEM (F*TB, H*W)  input image, tiled F times along sublanes.
    xhat_ref : VMEM (TB, H*W)    output: decoder reconstruction (full canvas).
    zhat_ref : VMEM (F*TB, H*W)  output: packed code canvas (zero border).
    """
    HW = H * W
    KK = kd * kd
    thr = lam * step

    # hoisted once, reused by every pass (encoder, all ISTA layers, decoder)
    cols = [wb_ref[k] for k in range(KK)]          # KK x (F*TB, HW) weight planes
    mask = mask_ref[...]                           # (F*TB, HW)
    x_t = x_ref[...]                               # (F*TB, HW)  f-tiled image
    x_b = x_t[:TB, :]                              # (TB, HW)
    shifts = [di * W + dj for di in range(kd) for dj in range(kd)]

    def roll(v, s):
        # circular shift along the flattened H*W lane axis (XLU slot, ~free)
        s = s % HW
        return v if s == 0 else pltpu.roll(v, s, 1)

    def nonlin(v):
        if twosided:
            return v - jnp.clip(v, -thr, thr)      # soft threshold, 3 VALU ops
        return jnp.maximum(v - thr, 0.0)

    def conv(src_t):
        """VALID conv2d on the packed (F*TB, HW) stack (num_ch == 1).

        Border of the result is garbage (wrap-around); callers mask it.
        """
        acc = None
        for k, s in enumerate(shifts):
            term = roll(src_t, -s) * cols[k]
            acc = term if acc is None else acc + term
        return acc                                  # (F*TB, HW)

    def conv_t(z_p):
        """conv_transpose2d of the packed zero-bordered code -> (TB, HW) image.

        kd*kd rolls of the full packed stack, then a sublane-group sum over f.
        Exact on the whole canvas: wrap-around reads land in the zero border.
        """
        acc = None
        for k, s in enumerate(shifts):
            term = roll(z_p, s) * cols[k]
            acc = term if acc is None else acc + term
        out = acc[:TB, :]
        for f in range(1, F):
            out = out + acc[f * TB:(f + 1) * TB, :]
        return out

    # ---- encoder: zhat = nonlin(step * conv2d(x, W)), zero border kept exact ----
    z = mask * nonlin(step * conv(x_t))

    # ---- unrolled ISTA iterations (small num_layers -> full unroll is right) ----
    for _ in range(num_layers - 1):
        res = conv_t(z) - x_b                       # (TB, HW)
        grad = conv(jnp.tile(res, (F, 1)))          # (F*TB, HW)
        z = mask * nonlin(z - step * grad)

    # ---- decoder + single dense final stores (only VMEM writes in the kernel) ----
    xhat_ref[...] = conv_t(z)
    zhat_ref[...] = z


def _pick_tile_b(B, F):
    """Batch tile so the packed sublane count F*TB fills whole 8-row vregs,
    preferring >= 32 packed rows to amortize per-grid-step overhead."""
    divs = [t for t in range(1, B + 1) if B % t == 0]
    for cond in (lambda r: r % 8 == 0 and r >= 32,
                 lambda r: r % 8 == 0,
                 lambda r: True):
        for t in divs:
            if cond(F * t):
                return t
    return B


def cae_forward(x, Wfilt, *, num_layers, lam, step, twosided, stride, split_stride):
    assert stride == 1 and split_stride == 1  # TODO(synk): split_stride > 1 path
    B, C, H, Wd = x.shape
    F_, C2, kd, kd2 = Wfilt.shape
    assert C2 == C and kd == kd2
    assert C == 1  # TODO(synk): num_ch > 1 packed path
    HW = H * Wd
    # lane-roll formulation requirements (see review correctness concerns)
    assert HW % 128 == 0, "flattened spatial axis must be a multiple of 128 lanes"
    assert H >= kd and Wd >= kd, "need a kd-1 zero border on the code canvas"
    Hz, Wz = H - kd + 1, Wd - kd + 1

    TB = _pick_tile_b(B, F_)        # batch tile; F_*TB = packed sublane rows
    NB = B // TB                    # grid steps (parallel -> both v7x TCs)
    FT = F_ * TB
    KK = kd * kd
    f32 = jnp.float32

    # x: (B, 1, H, W) -> batch tiles, each tiled F_ times along the sublane axis
    x_flat = x.astype(f32).reshape(NB, TB, HW)
    x_tiled = jnp.tile(x_flat[:, None, :, :], (1, F_, 1, 1)).reshape(NB, FT, HW)

    # validity mask of the code canvas (1 where i<Hz and j<Wz), packed to (FT, HW)
    mrow = (jnp.arange(H) < Hz)[:, None]
    mcol = (jnp.arange(Wd) < Wz)[None, :]
    mask = jnp.broadcast_to((mrow & mcol).astype(f32).reshape(1, HW), (FT, HW))

    # weight planes: plane k=di*kd+dj, row f*TB+b = W[f,0,di,dj], lane-broadcast
    wcols = jnp.repeat(Wfilt.astype(f32).reshape(F_, KK), TB, axis=0)      # (FT, KK)
    wb = jnp.broadcast_to(jnp.transpose(wcols)[:, :, None], (KK, FT, HW))  # (KK,FT,HW)

    kernel = functools.partial(
        _cae_kernel, TB=TB, F=F_, kd=kd, H=H, W=Wd,
        num_layers=num_layers, lam=float(lam), step=float(step), twosided=twosided)

    xhat_p, zhat_p = pl.pallas_call(
        kernel,
        grid=(NB,),
        out_shape=(jax.ShapeDtypeStruct((NB, TB, HW), f32),    # xhat canvas
                   jax.ShapeDtypeStruct((NB, FT, HW), f32)),   # zhat packed canvas
        in_specs=[pl.BlockSpec((KK, FT, HW), lambda i: (0, 0, 0)),   # weight planes
                  pl.BlockSpec((FT, HW), lambda i: (0, 0)),          # mask
                  pl.BlockSpec((None, FT, HW), lambda i: (i, 0, 0))],  # x tile
        out_specs=(pl.BlockSpec((None, TB, HW), lambda i: (i, 0, 0)),
                   pl.BlockSpec((None, FT, HW), lambda i: (i, 0, 0))),
        compiler_params=pltpu.CompilerParams(dimension_semantics=("parallel",)),
    )(wb, mask, x_tiled)

    # back to the PyTorch module's layout (wrapper-side layout plumbing only)
    xhat = xhat_p.reshape(B, C, H, Wd)
    zhat = (zhat_p.reshape(NB, F_, TB, H, Wd)
            .transpose(0, 2, 1, 3, 4)
            .reshape(B, F_, H, Wd)[:, :, :Hz, :Wz])
    return xhat, zhat


# ------------------------- pure-JAX reference --------------------------------
def _conv2d_ref(x, W):
    return jax.lax.conv_general_dilated(
        x, W, window_strides=(1, 1), padding='VALID',
        dimension_numbers=('NCHW', 'OIHW', 'NCHW'))


def _conv_t2d_ref(z, W):
    kd = W.shape[-1]
    Wt = jnp.transpose(jnp.flip(W, axis=(-1, -2)), (1, 0, 2, 3))
    return jax.lax.conv_general_dilated(
        z, Wt, window_strides=(1, 1),
        padding=[(kd - 1, kd - 1), (kd - 1, kd - 1)],
        dimension_numbers=('NCHW', 'OIHW', 'NCHW'))


def cae_reference(x, W, *, num_layers, lam, step, twosided):
    def nonlin(z):
        thr = lam * step
        if twosided:
            return jnp.maximum(jnp.abs(z) - thr, 0.0) * jnp.sign(z)
        return jnp.maximum(z - thr, 0.0)

    zhat = nonlin(_conv2d_ref(x, W) * step)
    for _ in range(num_layers - 1):
        res = _conv_t2d_ref(zhat, W) - x
        grad = _conv2d_ref(res, W)
        zhat = nonlin(zhat - grad * step)
    xhat = _conv_t2d_ref(zhat, W)
    return xhat, zhat


# ----------------------------------- main -------------------------------------
if __name__ == "__main__":
    p = PARAMS
    B, H, Wd = 2, 16, 16
    C, F_, kd = p['num_ch'], p['num_conv'], p['dictionary_dim']

    key = jax.random.PRNGKey(0)
    k_w, k_x = jax.random.split(key)

    # deterministic dictionary init, matching torch: randn -> frob-normalize per
    # (f, c) spatial plane -> divide by num_ch.
    Wfilt = jax.random.normal(k_w, (F_, C, kd, kd), jnp.float32)
    fro = jnp.sqrt(jnp.sum(Wfilt ** 2, axis=(-1, -2), keepdims=True))
    Wfilt = Wfilt / fro / C

    x = jax.random.normal(k_x, (B, C, H, Wd), jnp.float32)

    xhat, zhat = cae_forward(
        x, Wfilt,
        num_layers=p['num_layers'], lam=p['lam'], step=p['step'],
        twosided=p['twosided'], stride=p['stride'], split_stride=p['split_stride'])
    xhat = jax.block_until_ready(xhat)
    zhat = jax.block_until_ready(zhat)

    xhat_ref, zhat_ref = cae_reference(
        x, Wfilt, num_layers=p['num_layers'], lam=p['lam'], step=p['step'],
        twosided=p['twosided'])

    assert xhat.shape == (B, C, H, Wd)
    assert zhat.shape == (B, F_, H - kd + 1, Wd - kd + 1)
    assert jnp.allclose(xhat, xhat_ref, atol=1e-4, rtol=1e-4)
    assert jnp.allclose(zhat, zhat_ref, atol=1e-4, rtol=1e-4)

    print("KERNEL_OK")
</pallas_src>

<mosaic_0001>
module attributes {stable_mosaic.version = 11 : i64} {
  func.func @_cae_kernel(%arg0: i32, %arg1: memref<9x8x256xf32, #tpu.memory_space<vmem>>, %arg2: memref<8x256xf32, #tpu.memory_space<vmem>>, %arg3: memref<1x8x256xf32, #tpu.memory_space<vmem>>, %arg4: memref<1x2x256xf32, #tpu.memory_space<vmem>>, %arg5: memref<1x8x256xf32, #tpu.memory_space<vmem>>) attributes {dimension_semantics = [#tpu.dimension_semantics<parallel>], iteration_bounds = array<i64: 1>, scalar_prefetch = 0 : i64, scratch_operands = 0 : i64, tpu.core_type = #tpu.core_type<tc>, window_params = [{pipeline_mode = #tpu.pipeline_mode<synchronous>, transform_indices = @transform_0, window_bounds = array<i64: 9, 8, 256>}, {pipeline_mode = #tpu.pipeline_mode<synchronous>, transform_indices = @transform_1, window_bounds = array<i64: 8, 256>}, {transform_indices = @transform_2, window_bounds = array<i64: 1, 8, 256>}, {transform_indices = @transform_3, window_bounds = array<i64: 1, 2, 256>}, {transform_indices = @transform_4, window_bounds = array<i64: 1, 8, 256>}]} {
    %c0 = arith.constant 0 : index
    %c0_0 = arith.constant 0 : index
    %c0_1 = arith.constant 0 : index
    %0 = vector.load %arg1[%c0, %c0_0, %c0_1] : memref<9x8x256xf32, #tpu.memory_space<vmem>>, vector<1x8x256xf32>
    %1 = vector.shape_cast %0 : vector<1x8x256xf32> to vector<8x256xf32>
    %c1 = arith.constant 1 : index
    %c0_2 = arith.constant 0 : index
    %c0_3 = arith.constant 0 : index
    %2 = vector.load %arg1[%c1, %c0_2, %c0_3] : memref<9x8x256xf32, #tpu.memory_space<vmem>>, vector<1x8x256xf32>
    %3 = vector.shape_cast %2 : vector<1x8x256xf32> to vector<8x256xf32>
    %c2 = arith.constant 2 : index
    %c0_4 = arith.constant 0 : index
    %c0_5 = arith.constant 0 : index
    %4 = vector.load %arg1[%c2, %c0_4, %c0_5] : memref<9x8x256xf32, #tpu.memory_space<vmem>>, vector<1x8x256xf32>
    %5 = vector.shape_cast %4 : vector<1x8x256xf32> to vector<8x256xf32>
    %c3 = arith.constant 3 : index
    %c0_6 = arith.constant 0 : index
    %c0_7 = arith.constant 0 : index
    %6 = vector.load %arg1[%c3, %c0_6, %c0_7] : memref<9x8x256xf32, #tpu.memory_space<vmem>>, vector<1x8x256xf32>
    %7 = vector.shape_cast %6 : vector<1x8x256xf32> to vector<8x256xf32>
    %c4 = arith.constant 4 : index
    %c0_8 = arith.constant 0 : index
    %c0_9 = arith.constant 0 : index
    %8 = vector.load %arg1[%c4, %c0_8, %c0_9] : memref<9x8x256xf32, #tpu.memory_space<vmem>>, vector<1x8x256xf32>
    %9 = vector.shape_cast %8 : vector<1x8x256xf32> to vector<8x256xf32>
    %c5 = arith.constant 5 : index
    %c0_10 = arith.constant 0 : index
    %c0_11 = arith.constant 0 : index
    %10 = vector.load %arg1[%c5, %c0_10, %c0_11] : memref<9x8x256xf32, #tpu.memory_space<vmem>>, vector<1x8x256xf32>
    %11 = vector.shape_cast %10 : vector<1x8x256xf32> to vector<8x256xf32>
    %c6 = arith.constant 6 : index
    %c0_12 = arith.constant 0 : index
    %c0_13 = arith.constant 0 : index
    %12 = vector.load %arg1[%c6, %c0_12, %c0_13] : memref<9x8x256xf32, #tpu.memory_space<vmem>>, vector<1x8x256xf32>
    %13 = vector.shape_cast %12 : vector<1x8x256xf32> to vector<8x256xf32>
    %c7 = arith.constant 7 : index
    %c0_14 = arith.constant 0 : index
    %c0_15 = arith.constant 0 : index
    %14 = vector.load %arg1[%c7, %c0_14, %c0_15] : memref<9x8x256xf32, #tpu.memory_space<vmem>>, vector<1x8x256xf32>
    %15 = vector.shape_cast %14 : vector<1x8x256xf32> to vector<8x256xf32>
    %c8 = arith.constant 8 : index
    %c0_16 = arith.constant 0 : index
    %c0_17 = arith.constant 0 : index
    %16 = vector.load %arg1[%c8, %c0_16, %c0_17] : memref<9x8x256xf32, #tpu.memory_space<vmem>>, vector<1x8x256xf32>
    %17 = vector.shape_cast %16 : vector<1x8x256xf32> to vector<8x256xf32>
    %c0_18 = arith.constant 0 : index
    %c0_19 = arith.constant 0 : index
    %18 = vector.load %arg2[%c0_18, %c0_19] : memref<8x256xf32, #tpu.memory_space<vmem>>, vector<8x256xf32>
    %c0_20 = arith.constant 0 : index
    %c0_21 = arith.constant 0 : index
    %c0_22 = arith.constant 0 : index
    %19 = vector.load %arg3[%c0_20, %c0_21, %c0_22] : memref<1x8x256xf32, #tpu.memory_space<vmem>>, vector<1x8x256xf32>
    %20 = vector.shape_cast %19 : vector<1x8x256xf32> to vector<8x256xf32>
    %21 = vector.extract_strided_slice %20 {offsets = [0, 0], sizes = [2, 256], strides = [1, 1]} : vector<8x256xf32> to vector<2x256xf32>
    %22 = arith.mulf %20, %1 : vector<8x256xf32>
    %c255_i32 = arith.constant 255 : i32
    %23 = tpu.dynamic_rotate %20 by %c255_i32 dim 1 : vector<8x256xf32>, i32 -> vector<8x256xf32>
    %24 = arith.mulf %23, %3 : vector<8x256xf32>
    %25 = arith.addf %22, %24 : vector<8x256xf32>
    %c254_i32 = arith.constant 254 : i32
    %26 = tpu.dynamic_rotate %20 by %c254_i32 dim 1 : vector<8x256xf32>, i32 -> vector<8x256xf32>
    %27 = arith.mulf %26, %5 : vector<8x256xf32>
    %28 = arith.addf %25, %27 : vector<8x256xf32>
    %c240_i32 = arith.constant 240 : i32
    %29 = tpu.dynamic_rotate %20 by %c240_i32 dim 1 : vector<8x256xf32>, i32 -> vector<8x256xf32>
    %30 = arith.mulf %29, %7 : vector<8x256xf32>
    %31 = arith.addf %28, %30 : vector<8x256xf32>
    %c239_i32 = arith.constant 239 : i32
    %32 = tpu.dynamic_rotate %20 by %c239_i32 dim 1 : vector<8x256xf32>, i32 -> vector<8x256xf32>
    %33 = arith.mulf %32, %9 : vector<8x256xf32>
    %34 = arith.addf %31, %33 : vector<8x256xf32>
    %c238_i32 = arith.constant 238 : i32
    %35 = tpu.dynamic_rotate %20 by %c238_i32 dim 1 : vector<8x256xf32>, i32 -> vector<8x256xf32>
    %36 = arith.mulf %35, %11 : vector<8x256xf32>
    %37 = arith.addf %34, %36 : vector<8x256xf32>
    %c224_i32 = arith.constant 224 : i32
    %38 = tpu.dynamic_rotate %20 by %c224_i32 dim 1 : vector<8x256xf32>, i32 -> vector<8x256xf32>
    %39 = arith.mulf %38, %13 : vector<8x256xf32>
    %40 = arith.addf %37, %39 : vector<8x256xf32>
    %c223_i32 = arith.constant 223 : i32
    %41 = tpu.dynamic_rotate %20 by %c223_i32 dim 1 : vector<8x256xf32>, i32 -> vector<8x256xf32>
    %42 = arith.mulf %41, %15 : vector<8x256xf32>
    %43 = arith.addf %40, %42 : vector<8x256xf32>
    %c222_i32 = arith.constant 222 : i32
    %44 = tpu.dynamic_rotate %20 by %c222_i32 dim 1 : vector<8x256xf32>, i32 -> vector<8x256xf32>
    %45 = arith.mulf %44, %17 : vector<8x256xf32>
    %46 = arith.addf %43, %45 : vector<8x256xf32>
    %cst = arith.constant 1.000000e-01 : f32
    %47 = vector.broadcast %cst : f32 to vector<8x256xf32>
    %48 = arith.mulf %47, %46 : vector<8x256xf32>
    %cst_23 = arith.constant -5.000000e-02 : f32
    %cst_24 = arith.constant 5.000000e-02 : f32
    %49 = vector.broadcast %cst_23 : f32 to vector<8x256xf32>
    %50 = arith.maximumf %49, %48 : vector<8x256xf32>
    %51 = vector.broadcast %cst_24 : f32 to vector<8x256xf32>
    %52 = arith.minimumf %51, %50 : vector<8x256xf32>
    %53 = arith.subf %48, %52 : vector<8x256xf32>
    %54 = arith.mulf %18, %53 : vector<8x256xf32>
    %55 = arith.mulf %54, %1 : vector<8x256xf32>
    %c1_i32 = arith.constant 1 : i32
    %56 = tpu.dynamic_rotate %54 by %c1_i32 dim 1 : vector<8x256xf32>, i32 -> vector<8x256xf32>
    %57 = arith.mulf %56, %3 : vector<8x256xf32>
    %58 = arith.addf %55, %57 : vector<8x256xf32>
    %c2_i32 = arith.constant 2 : i32
    %59 = tpu.dynamic_rotate %54 by %c2_i32 dim 1 : vector<8x256xf32>, i32 -> vector<8x256xf32>
    %60 = arith.mulf %59, %5 : vector<8x256xf32>
    %61 = arith.addf %58, %60 : vector<8x256xf32>
    %c16_i32 = arith.constant 16 : i32
    %62 = tpu.dynamic_rotate %54 by %c16_i32 dim 1 : vector<8x256xf32>, i32 -> vector<8x256xf32>
    %63 = arith.mulf %62, %7 : vector<8x256xf32>
    %64 = arith.addf %61, %63 : vector<8x256xf32>
    %c17_i32 = arith.constant 17 : i32
    %65 = tpu.dynamic_rotate %54 by %c17_i32 dim 1 : vector<8x256xf32>, i32 -> vector<8x256xf32>
    %66 = arith.mulf %65, %9 : vector<8x256xf32>
    %67 = arith.addf %64, %66 : vector<8x256xf32>
    %c18_i32 = arith.constant 18 : i32
    %68 = tpu.dynamic_rotate %54 by %c18_i32 dim 1 : vector<8x256xf32>, i32 -> vector<8x256xf32>
    %69 = arith.mulf %68, %11 : vector<8x256xf32>
    %70 = arith.addf %67, %69 : vector<8x256xf32>
    %c32_i32 = arith.constant 32 : i32
    %71 = tpu.dynamic_rotate %54 by %c32_i32 dim 1 : vector<8x256xf32>, i32 -> vector<8x256xf32>
    %72 = arith.mulf %71, %13 : vector<8x256xf32>
    %73 = arith.addf %70, %72 : vector<8x256xf32>
    %c33_i32 = arith.constant 33 : i32
    %74 = tpu.dynamic_rotate %54 by %c33_i32 dim 1 : vector<8x256xf32>, i32 -> vector<8x256xf32>
    %75 = arith.mulf %74, %15 : vector<8x256xf32>
    %76 = arith.addf %73, %75 : vector<8x256xf32>
    %c34_i32 = arith.constant 34 : i32
    %77 = tpu.dynamic_rotate %54 by %c34_i32 dim 1 : vector<8x256xf32>, i32 -> vector<8x256xf32>
    %78 = arith.mulf %77, %17 : vector<8x256xf32>
    %79 = arith.addf %76, %78 : vector<8x256xf32>
    %80 = vector.extract_strided_slice %79 {offsets = [0, 0], sizes = [2, 256], strides = [1, 1]} : vector<8x256xf32> to vector<2x256xf32>
    %81 = vector.extract_strided_slice %79 {offsets = [2, 0], sizes = [2, 256], strides = [1, 1]} : vector<8x256xf32> to vector<2x256xf32>
    %82 = arith.addf %80, %81 : vector<2x256xf32>
    %83 = vector.extract_strided_slice %79 {offsets = [4, 0], sizes = [2, 256], strides = [1, 1]} : vector<8x256xf32> to vector<2x256xf32>
    %84 = arith.addf %82, %83 : vector<2x256xf32>
    %85 = vector.extract_strided_slice %79 {offsets = [6, 0], sizes = [2, 256], strides = [1, 1]} : vector<8x256xf32> to vector<2x256xf32>
    %86 = arith.addf %84, %85 : vector<2x256xf32>
    %87 = arith.subf %86, %21 : vector<2x256xf32>
    %88 = tpu.concatenate %87, %87, %87, %87 in 0 : vector<2x256xf32>, vector<2x256xf32>, vector<2x256xf32>, vector<2x256xf32> -> vector<8x256xf32>
    %89 = arith.mulf %88, %1 : vector<8x256xf32>
    %c255_i32_25 = arith.constant 255 : i32
    %90 = tpu.dynamic_rotate %88 by %c255_i32_25 dim 1 : vector<8x256xf32>, i32 -> vector<8x256xf32>
    %91 = arith.mulf %90, %3 : vector<8x256xf32>
    %92 = arith.addf %89, %91 : vector<8x256xf32>
    %c254_i32_26 = arith.constant 254 : i32
    %93 = tpu.dynamic_rotate %88 by %c254_i32_26 dim 1 : vector<8x256xf32>, i32 -> vector<8x256xf32>
    %94 = arith.mulf %93, %5 : vector<8x256xf32>
    %95 = arith.addf %92, %94 : vector<8x256xf32>
    %c240_i32_27 = arith.constant 240 : i32
    %96 = tpu.dynamic_rotate %88 by %c240_i32_27 dim 1 : vector<8x256xf32>, i32 -> vector<8x256xf32>
    %97 = arith.mulf %96, %7 : vector<8x256xf32>
    %98 = arith.addf %95, %97 : vector<8x256xf32>
    %c239_i32_28 = arith.constant 239 : i32
    %99 = tpu.dynamic_rotate %88 by %c239_i32_28 dim 1 : vector<8x256xf32>, i32 -> vector<8x256xf32>
    %100 = arith.mulf %99, %9 : vector<8x256xf32>
    %101 = arith.addf %98, %100 : vector<8x256xf32>
    %c238_i32_29 = arith.constant 238 : i32
    %102 = tpu.dynamic_rotate %88 by %c238_i32_29 dim 1 : vector<8x256xf32>, i32 -> vector<8x256xf32>
    %103 = arith.mulf %102, %11 : vector<8x256xf32>
    %104 = arith.addf %101, %103 : vector<8x256xf32>
    %c224_i32_30 = arith.constant 224 : i32
    %105 = tpu.dynamic_rotate %88 by %c224_i32_30 dim 1 : vector<8x256xf32>, i32 -> vector<8x256xf32>
    %106 = arith.mulf %105, %13 : vector<8x256xf32>
    %107 = arith.addf %104, %106 : vector<8x256xf32>
    %c223_i32_31 = arith.constant 223 : i32
    %108 = tpu.dynamic_rotate %88 by %c223_i32_31 dim 1 : vector<8x256xf32>, i32 -> vector<8x256xf32>
    %109 = arith.mulf %108, %15 : vector<8x256xf32>
    %110 = arith.addf %107, %109 : vector<8x256xf32>
    %c222_i32_32 = arith.constant 222 : i32
    %111 = tpu.dynamic_rotate %88 by %c222_i32_32 dim 1 : vector<8x256xf32>, i32 -> vector<8x256xf32>
    %112 = arith.mulf %111, %17 : vector<8x256xf32>
    %113 = arith.addf %110, %112 : vector<8x256xf32>
    %cst_33 = arith.constant 1.000000e-01 : f32
    %114 = vector.broadcast %cst_33 : f32 to vector<8x256xf32>
    %115 = arith.mulf %114, %113 : vector<8x256xf32>
    %116 = arith.subf %54, %115 : vector<8x256xf32>
    %cst_34 = arith.constant -5.000000e-02 : f32
    %cst_35 = arith.constant 5.000000e-02 : f32
    %117 = vector.broadcast %cst_34 : f32 to vector<8x256xf32>
    %118 = arith.maximumf %117, %116 : vector<8x256xf32>
    %119 = vector.broadcast %cst_35 : f32 to vector<8x256xf32>
    %120 = arith.minimumf %119, %118 : vector<8x256xf32>
    %121 = arith.subf %116, %120 : vector<8x256xf32>
    %122 = arith.mulf %18, %121 : vector<8x256xf32>
    %123 = arith.mulf %122, %1 : vector<8x256xf32>
    %c1_i32_36 = arith.constant 1 : i32
    %124 = tpu.dynamic_rotate %122 by %c1_i32_36 dim 1 : vector<8x256xf32>, i32 -> vector<8x256xf32>
    %125 = arith.mulf %124, %3 : vector<8x256xf32>
    %126 = arith.addf %123, %125 : vector<8x256xf32>
    %c2_i32_37 = arith.constant 2 : i32
    %127 = tpu.dynamic_rotate %122 by %c2_i32_37 dim 1 : vector<8x256xf32>, i32 -> vector<8x256xf32>
    %128 = arith.mulf %127, %5 : vector<8x256xf32>
    %129 = arith.addf %126, %128 : vector<8x256xf32>
    %c16_i32_38 = arith.constant 16 : i32
    %130 = tpu.dynamic_rotate %122 by %c16_i32_38 dim 1 : vector<8x256xf32>, i32 -> vector<8x256xf32>
    %131 = arith.mulf %130, %7 : vector<8x256xf32>
    %132 = arith.addf %129, %131 : vector<8x256xf32>
    %c17_i32_39 = arith.constant 17 : i32
    %133 = tpu.dynamic_rotate %122 by %c17_i32_39 dim 1 : vector<8x256xf32>, i32 -> vector<8x256xf32>
    %134 = arith.mulf %133, %9 : vector<8x256xf32>
    %135 = arith.addf %132, %134 : vector<8x256xf32>
    %c18_i32_40 = arith.constant 18 : i32
    %136 = tpu.dynamic_rotate %122 by %c18_i32_40 dim 1 : vector<8x256xf32>, i32 -> vector<8x256xf32>
    %137 = arith.mulf %136, %11 : vector<8x256xf32>
    %138 = arith.addf %135, %137 : vector<8x256xf32>
    %c32_i32_41 = arith.constant 32 : i32
    %139 = tpu.dynamic_rotate %122 by %c32_i32_41 dim 1 : vector<8x256xf32>, i32 -> vector<8x256xf32>
    %140 = arith.mulf %139, %13 : vector<8x256xf32>
    %141 = arith.addf %138, %140 : vector<8x256xf32>
    %c33_i32_42 = arith.constant 33 : i32
    %142 = tpu.dynamic_rotate %122 by %c33_i32_42 dim 1 : vector<8x256xf32>, i32 -> vector<8x256xf32>
    %143 = arith.mulf %142, %15 : vector<8x256xf32>
    %144 = arith.addf %141, %143 : vector<8x256xf32>
    %c34_i32_43 = arith.constant 34 : i32
    %145 = tpu.dynamic_rotate %122 by %c34_i32_43 dim 1 : vector<8x256xf32>, i32 -> vector<8x256xf32>
    %146 = arith.mulf %145, %17 : vector<8x256xf32>
    %147 = arith.addf %144, %146 : vector<8x256xf32>
    %148 = vector.extract_strided_slice %147 {offsets = [0, 0], sizes = [2, 256], strides = [1, 1]} : vector<8x256xf32> to vector<2x256xf32>
    %149 = vector.extract_strided_slice %147 {offsets = [2, 0], sizes = [2, 256], strides = [1, 1]} : vector<8x256xf32> to vector<2x256xf32>
    %150 = arith.addf %148, %149 : vector<2x256xf32>
    %151 = vector.extract_strided_slice %147 {offsets = [4, 0], sizes = [2, 256], strides = [1, 1]} : vector<8x256xf32> to vector<2x256xf32>
    %152 = arith.addf %150, %151 : vector<2x256xf32>
    %153 = vector.extract_strided_slice %147 {offsets = [6, 0], sizes = [2, 256], strides = [1, 1]} : vector<8x256xf32> to vector<2x256xf32>
    %154 = arith.addf %152, %153 : vector<2x256xf32>
    %155 = arith.subf %154, %21 : vector<2x256xf32>
    %156 = tpu.concatenate %155, %155, %155, %155 in 0 : vector<2x256xf32>, vector<2x256xf32>, vector<2x256xf32>, vector<2x256xf32> -> vector<8x256xf32>
    %157 = arith.mulf %156, %1 : vector<8x256xf32>
    %c255_i32_44 = arith.constant 255 : i32
    %158 = tpu.dynamic_rotate %156 by %c255_i32_44 dim 1 : vector<8x256xf32>, i32 -> vector<8x256xf32>
    %159 = arith.mulf %158, %3 : vector<8x256xf32>
    %160 = arith.addf %157, %159 : vector<8x256xf32>
    %c254_i32_45 = arith.constant 254 : i32
    %161 = tpu.dynamic_rotate %156 by %c254_i32_45 dim 1 : vector<8x256xf32>, i32 -> vector<8x256xf32>
    %162 = arith.mulf %161, %5 : vector<8x256xf32>
    %163 = arith.addf %160, %162 : vector<8x256xf32>
    %c240_i32_46 = arith.constant 240 : i32
    %164 = tpu.dynamic_rotate %156 by %c240_i32_46 dim 1 : vector<8x256xf32>, i32 -> vector<8x256xf32>
    %165 = arith.mulf %164, %7 : vector<8x256xf32>
    %166 = arith.addf %163, %165 : vector<8x256xf32>
    %c239_i32_47 = arith.constant 239 : i32
    %167 = tpu.dynamic_rotate %156 by %c239_i32_47 dim 1 : vector<8x256xf32>, i32 -> vector<8x256xf32>
    %168 = arith.mulf %167, %9 : vector<8x256xf32>
    %169 = arith.addf %166, %168 : vector<8x256xf32>
    %c238_i32_48 = arith.constant 238 : i32
    %170 = tpu.dynamic_rotate %156 by %c238_i32_48 dim 1 : vector<8x256xf32>, i32 -> vector<8x256xf32>
    %171 = arith.mulf %170, %11 : vector<8x256xf32>
    %172 = arith.addf %169, %171 : vector<8x256xf32>
    %c224_i32_49 = arith.constant 224 : i32
    %173 = tpu.dynamic_rotate %156 by %c224_i32_49 dim 1 : vector<8x256xf32>, i32 -> vector<8x256xf32>
    %174 = arith.mulf %173, %13 : vector<8x256xf32>
    %175 = arith.addf %172, %174 : vector<8x256xf32>
    %c223_i32_50 = arith.constant 223 : i32
    %176 = tpu.dynamic_rotate %156 by %c223_i32_50 dim 1 : vector<8x256xf32>, i32 -> vector<8x256xf32>
    %177 = arith.mulf %176, %15 : vector<8x256xf32>
    %178 = arith.addf %175, %177 : vector<8x256xf32>
    %c222_i32_51 = arith.constant 222 : i32
    %179 = tpu.dynamic_rotate %156 by %c222_i32_51 dim 1 : vector<8x256xf32>, i32 -> vector<8x256xf32>
    %180 = arith.mulf %179, %17 : vector<8x256xf32>
    %181 = arith.addf %178, %180 : vector<8x256xf32>
    %cst_52 = arith.constant 1.000000e-01 : f32
    %182 = vector.broadcast %cst_52 : f32 to vector<8x256xf32>
    %183 = arith.mulf %182, %181 : vector<8x256xf32>
    %184 = arith.subf %122, %183 : vector<8x256xf32>
    %cst_53 = arith.constant -5.000000e-02 : f32
    %cst_54 = arith.constant 5.000000e-02 : f32
    %185 = vector.broadcast %cst_53 : f32 to vector<8x256xf32>
    %186 = arith.maximumf %185, %184 : vector<8x256xf32>
    %187 = vector.broadcast %cst_54 : f32 to vector<8x256xf32>
    %188 = arith.minimumf %187, %186 : vector<8x256xf32>
    %189 = arith.subf %184, %188 : vector<8x256xf32>
    %190 = arith.mulf %18, %189 : vector<8x256xf32>
    %191 = arith.mulf %190, %1 : vector<8x256xf32>
    %c1_i32_55 = arith.constant 1 : i32
    %192 = tpu.dynamic_rotate %190 by %c1_i32_55 dim 1 : vector<8x256xf32>, i32 -> vector<8x256xf32>
    %193 = arith.mulf %192, %3 : vector<8x256xf32>
    %194 = arith.addf %191, %193 : vector<8x256xf32>
    %c2_i32_56 = arith.constant 2 : i32
    %195 = tpu.dynamic_rotate %190 by %c2_i32_56 dim 1 : vector<8x256xf32>, i32 -> vector<8x256xf32>
    %196 = arith.mulf %195, %5 : vector<8x256xf32>
    %197 = arith.addf %194, %196 : vector<8x256xf32>
    %c16_i32_57 = arith.constant 16 : i32
    %198 = tpu.dynamic_rotate %190 by %c16_i32_57 dim 1 : vector<8x256xf32>, i32 -> vector<8x256xf32>
    %199 = arith.mulf %198, %7 : vector<8x256xf32>
    %200 = arith.addf %197, %199 : vector<8x256xf32>
    %c17_i32_58 = arith.constant 17 : i32
    %201 = tpu.dynamic_rotate %190 by %c17_i32_58 dim 1 : vector<8x256xf32>, i32 -> vector<8x256xf32>
    %202 = arith.mulf %201, %9 : vector<8x256xf32>
    %203 = arith.addf %200, %202 : vector<8x256xf32>
    %c18_i32_59 = arith.constant 18 : i32
    %204 = tpu.dynamic_rotate %190 by %c18_i32_59 dim 1 : vector<8x256xf32>, i32 -> vector<8x256xf32>
    %205 = arith.mulf %204, %11 : vector<8x256xf32>
    %206 = arith.addf %203, %205 : vector<8x256xf32>
    %c32_i32_60 = arith.constant 32 : i32
    %207 = tpu.dynamic_rotate %190 by %c32_i32_60 dim 1 : vector<8x256xf32>, i32 -> vector<8x256xf32>
    %208 = arith.mulf %207, %13 : vector<8x256xf32>
    %209 = arith.addf %206, %208 : vector<8x256xf32>
    %c33_i32_61 = arith.constant 33 : i32
    %210 = tpu.dynamic_rotate %190 by %c33_i32_61 dim 1 : vector<8x256xf32>, i32 -> vector<8x256xf32>
    %211 = arith.mulf %210, %15 : vector<8x256xf32>
    %212 = arith.addf %209, %211 : vector<8x256xf32>
    %c34_i32_62 = arith.constant 34 : i32
    %213 = tpu.dynamic_rotate %190 by %c34_i32_62 dim 1 : vector<8x256xf32>, i32 -> vector<8x256xf32>
    %214 = arith.mulf %213, %17 : vector<8x256xf32>
    %215 = arith.addf %212, %214 : vector<8x256xf32>
    %216 = vector.extract_strided_slice %215 {offsets = [0, 0], sizes = [2, 256], strides = [1, 1]} : vector<8x256xf32> to vector<2x256xf32>
    %217 = vector.extract_strided_slice %215 {offsets = [2, 0], sizes = [2, 256], strides = [1, 1]} : vector<8x256xf32> to vector<2x256xf32>
    %218 = arith.addf %216, %217 : vector<2x256xf32>
    %219 = vector.extract_strided_slice %215 {offsets = [4, 0], sizes = [2, 256], strides = [1, 1]} : vector<8x256xf32> to vector<2x256xf32>
    %220 = arith.addf %218, %219 : vector<2x256xf32>
    %221 = vector.extract_strided_slice %215 {offsets = [6, 0], sizes = [2, 256], strides = [1, 1]} : vector<8x256xf32> to vector<2x256xf32>
    %222 = arith.addf %220, %221 : vector<2x256xf32>
    %c0_63 = arith.constant 0 : index
    %c0_64 = arith.constant 0 : index
    %c0_65 = arith.constant 0 : index
    %223 = vector.load %arg4[%c0_63, %c0_64, %c0_65] : memref<1x2x256xf32, #tpu.memory_space<vmem>>, vector<1x2x256xf32>
    %224 = vector.shape_cast %223 : vector<1x2x256xf32> to vector<2x256xf32>
    %225 = vector.shape_cast %222 : vector<2x256xf32> to vector<1x2x256xf32>
    tpu.vector_store %arg4[%c0_63, %c0_64, %c0_65], %225 {strides = array<i32>} : memref<1x2x256xf32, #tpu.memory_space<vmem>>, vector<1x2x256xf32>,
    %c0_66 = arith.constant 0 : index
    %c0_67 = arith.constant 0 : index
    %c0_68 = arith.constant 0 : index
    %226 = vector.load %arg5[%c0_66, %c0_67, %c0_68] : memref<1x8x256xf32, #tpu.memory_space<vmem>>, vector<1x8x256xf32>
    %227 = vector.shape_cast %226 : vector<1x8x256xf32> to vector<8x256xf32>
    %228 = vector.shape_cast %190 : vector<8x256xf32> to vector<1x8x256xf32>
    tpu.vector_store %arg5[%c0_66, %c0_67, %c0_68], %228 {strides = array<i32>} : memref<1x8x256xf32, #tpu.memory_space<vmem>>, vector<1x8x256xf32>,
    return
  }
  func.func @transform_0(%arg0: i32) -> (i32, i32, i32) {
    %c0_i32 = arith.constant 0 : i32
    %c0_i32_0 = arith.constant 0 : i32
    %c0_i32_1 = arith.constant 0 : i32
    %c0_i32_2 = arith.constant 0 : i32
    return %c0_i32, %c0_i32_0, %c0_i32_1 : i32, i32, i32
  }
  func.func @transform_1(%arg0: i32) -> (i32, i32) {
    %c0_i32 = arith.constant 0 : i32
    %c0_i32_0 = arith.constant 0 : i32
    %c0_i32_1 = arith.constant 0 : i32
    return %c0_i32, %c0_i32_0 : i32, i32
  }
  func.func @transform_2(%arg0: i32) -> (i32, i32, i32) {
    %c0_i32 = arith.constant 0 : i32
    %c0_i32_0 = arith.constant 0 : i32
    %c0_i32_1 = arith.constant 0 : i32
    return %arg0, %c0_i32, %c0_i32_0 : i32, i32, i32
  }
  func.func @transform_3(%arg0: i32) -> (i32, i32, i32) {
    %c0_i32 = arith.constant 0 : i32
    %c0_i32_0 = arith.constant 0 : i32
    %c0_i32_1 = arith.constant 0 : i32
    return %arg0, %c0_i32, %c0_i32_0 : i32, i32, i32
  }
  func.func @transform_4(%arg0: i32) -> (i32, i32, i32) {
    %c0_i32 = arith.constant 0 : i32
    %c0_i32_0 = arith.constant 0 : i32
    %c0_i32_1 = arith.constant 0 : i32
    return %arg0, %c0_i32, %c0_i32_0 : i32, i32, i32
  }
}

</mosaic_0001>

<llo_original>
// kernel: tpu_custom_call.1
$region0: #{tpu_custom_call.1}
  #allocation0 [shape = 'u32[]', space=smem, size = 0x4, offset = 0x4, fixed_abs, tag = 'smem constant byte address 0x4 - core index']
  #allocation1 [shape = 'u32[144,128]{1,0:T(1,128)}', space=vmem, size = 0x12000, scoped, tag = 'internal scratch']
  %s0 = inlined_call_operand.hbm [shape: f32[9,8,256], index: 0, kind: input, shape index: {}]
  %s1 = inlined_call_operand.hbm [shape: f32[8,256], index: 1, kind: input, shape index: {}]
  %s2 = inlined_call_operand.hbm [shape: f32[1,8,256], index: 2, kind: input, shape index: {}]
  %s3 = inlined_call_operand.hbm [shape: f32[1,2,256], index: 3, kind: output, shape index: {0}]
  %s4 = inlined_call_operand.hbm [shape: f32[1,8,256], index: 4, kind: output, shape index: {1}]
  %5 = xla_tuple %s3, %s4
  %s6 = sld [smem:[#allocation0]]
  $region42: #{tpu_custom_call.1} parent=0
    _
  %s8 = ssub.s32 1, %s6
  %s9 = scalar_select 0, %s8, %s6
  $region1: #{tpu_custom_call.1} parent=0
    #allocation2 [shape = 'u8[73728]{0}', space=vmem, size = 0x12000, scoped, tag = 'input window, operand 0, single buffered']
    #allocation3 [shape = 's32[1]{0}', space=sflag, size = 0x4, scoped, tag = 'scoped memory for tpu_custom_call.1']
    #allocation4 [shape = 's32[1]{0}', space=sflag, size = 0x4, scoped, tag = 'scoped memory for tpu_custom_call.1']
    #allocation5 [shape = 'u8[8192]{0}', space=vmem, size = 0x2000, scoped, tag = 'input window, operand 1, single buffered']
    #allocation6 [shape = 's32[1]{0}', space=sflag, size = 0x4, scoped, tag = 'scoped memory for tpu_custom_call.1']
    #allocation7 [shape = 'u8[8192]{0}', space=vmem, size = 0x2000, scoped, tag = 'input window, operand 2, single buffered']
    #allocation8 [shape = 'u8[2048]{0}', space=vmem, size = 0x800, scoped, tag = 'output window, operand 0, single buffered']
    #allocation9 [shape = 'u8[8192]{0}', space=vmem, size = 0x2000, scoped, tag = 'output window, operand 1, single buffered']
    #allocation10 [shape = 's32[1]{0}', space=sflag, size = 0x4, scoped, tag = 'scoped memory for tpu_custom_call.1']
    %10 = vsyncpa [#allocation3], 0
    %11 = vsyncpa [#allocation6], 0
    %12 = vsyncpa [#allocation4], 0
    %13 = vsyncpa [#allocation10], 0
    // Predicated region
    $region2: #{tpu_custom_call.1} parent=1 // pred_check
      _
    $region3: #{tpu_custom_call.1} parent=1 // pred_check_branch
      %15 = sbr.rel (0) target = $region5
    $region4: #{tpu_custom_call.1} parent=1 // pred_region
      %s17 = ssub.s32 2304, 2304
      %18 = vsyncadd [#allocation3], %s17
      %s19 = sshll.u32 [#allocation2], 4
      %s20 = int_to_ptr.vmem [resolvable:$true] %s19
      %25 = dma.hbm_to_vmem [thread:$0]  %s0, 2304, %s20, [#allocation3], 256, 256, 16
    $region5: #{tpu_custom_call.1} parent=1 // pred_fallthru
      _
    // Predicated region
    $region6: #{tpu_custom_call.1} parent=1 // pred_check
      _
    $region7: #{tpu_custom_call.1} parent=1 // pred_check_branch
      %27 = sbr.rel (0) target = $region9
    $region8: #{tpu_custom_call.1} parent=1 // pred_region
      %s29 = ssub.s32 256, 256
      %30 = vsyncadd [#allocation6], %s29
      %s32 = sshll.u32 [#allocation5], 4
      %s33 = int_to_ptr.vmem [resolvable:$true] %s32
      %35 = dma.hbm_to_vmem [thread:$0]  %s1, 256, %s33, [#allocation6]
    $region9: #{tpu_custom_call.1} parent=1 // pred_fallthru
      _
    // Predicated region
    $region10: #{tpu_custom_call.1} parent=1 // pred_check
      _
    $region11: #{tpu_custom_call.1} parent=1 // pred_check_branch
      %37 = sbr.rel (0) target = $region13
    $region12: #{tpu_custom_call.1} parent=1 // pred_region
      %s39 = ssub.s32 256, 256
      %40 = vsyncadd [#allocation6], %s39
      %s42 = sshll.u32 [#allocation7], 4
      %s43 = int_to_ptr.vmem [resolvable:$true] %s42
      %45 = dma.hbm_to_vmem [thread:$0]  %s2, 256, %s43, [#allocation6]
    $region13: #{tpu_custom_call.1} parent=1 // pred_fallthru
      _
    // Predicated region
    $region14: #{tpu_custom_call.1} parent=1 // pred_check
      _
    $region15: #{tpu_custom_call.1} parent=1 // pred_check_branch
      %47 = sbr.rel (0) target = $region17
    $region16: #{tpu_custom_call.1} parent=1 // pred_region
      %48 = dma.done [#allocation3], 2304
    $region17: #{tpu_custom_call.1} parent=1 // pred_fallthru
      _
    // Predicated region
    $region18: #{tpu_custom_call.1} parent=1 // pred_check
      _
    $region19: #{tpu_custom_call.1} parent=1 // pred_check_branch
      %50 = sbr.rel (0) target = $region21
    $region20: #{tpu_custom_call.1} parent=1 // pred_region
      %51 = dma.done [#allocation6], 256
    $region21: #{tpu_custom_call.1} parent=1 // pred_fallthru
      _
    // Predicated region
    $region22: #{tpu_custom_call.1} parent=1 // pred_check
      _
    $region23: #{tpu_custom_call.1} parent=1 // pred_check_branch
      %53 = sbr.rel (0) target = $region25
    $region24: #{tpu_custom_call.1} parent=1 // pred_region
      %54 = dma.done [#allocation6], 256
    $region25: #{tpu_custom_call.1} parent=1 // pred_fallthru
      _
    %v55 = vld [vmem:[#allocation2] sm:$0xff]
    %v56 = vld [vmem:[#allocation2 + $0x8] sm:$0xff]
    %s57 = scalar_lea.vmem [#allocation2], 16
    %v58 = vld [vmem:[%s57] sm:$0xff]
    %v59 = vld [vmem:[%s57 + $0x8] sm:$0xff]
    %s60 = scalar_lea.vmem [#allocation2], 32
    %v61 = vld [vmem:[%s60] sm:$0xff]
    %v62 = vld [vmem:[%s60 + $0x8] sm:$0xff]
    %s63 = scalar_lea.vmem [#allocation2], 48
    %v64 = vld [vmem:[%s63] sm:$0xff]
    %v65 = vld [vmem:[%s63 + $0x8] sm:$0xff]
    %s66 = scalar_lea.vmem [#allocation2], 64
    %v67 = vld [vmem:[%s66] sm:$0xff]
    %v68 = vld [vmem:[%s66 + $0x8] sm:$0xff]
    %s69 = scalar_lea.vmem [#allocation2], 80
    %v70 = vld [vmem:[%s69] sm:$0xff]
    %v71 = vld [vmem:[%s69 + $0x8] sm:$0xff]
    %s72 = scalar_lea.vmem [#allocation2], 96
    %v73 = vld [vmem:[%s72] sm:$0xff]
    %v74 = vld [vmem:[%s72 + $0x8] sm:$0xff]
    %s75 = scalar_lea.vmem [#allocation2], 112
    %v76 = vld [vmem:[%s75] sm:$0xff]
    %v77 = vld [vmem:[%s75 + $0x8] sm:$0xff]
    %s78 = scalar_lea.vmem [#allocation2], 128
    %v79 = vld [vmem:[%s78] sm:$0xff]
    %v80 = vld [vmem:[%s78 + $0x8] sm:$0xff]
    %v81 = vld [vmem:[#allocation5] sm:$0xff]
    %v82 = vld [vmem:[#allocation5 + $0x8] sm:$0xff]
    %v83 = vld [vmem:[#allocation7] sm:$0xff]
    %v84 = vld [vmem:[#allocation7 + $0x8] sm:$0xff]
    %v85 = vmul.f32 %v83, %v55
    %v86 = vmul.f32 %v84, %v56
    %87 = vrot.lane.b32.xlu0 %v83, 127
    %v88 = vpop.permute.xlu0 %87
    %89 = vrot.lane.b32.xlu0 %v84, 127
    %v90 = vpop.permute.xlu0 %89
    %v91 = vlaneseq
    %v92 = vand.u32 %v91, 127
    %vm93 = vcmp.lt.s32.totalorder %v92, 127
    %v94 = vsel %vm93, %v88, %v90
    %v95 = vsel %vm93, %v90, %v88
    %v96 = vmul.f32 %v94, %v58
    %v97 = vmul.f32 %v95, %v59
    %v98 = vadd.f32 %v85, %v96
    %v99 = vadd.f32 %v86, %v97
    %100 = vrot.lane.b32.xlu0 %v83, 126
    %v101 = vpop.permute.xlu0 %100
    %102 = vrot.lane.b32.xlu0 %v84, 126
    %v103 = vpop.permute.xlu0 %102
    %vm104 = vcmp.lt.s32.totalorder %v92, 126
    %v105 = vsel %vm104, %v101, %v103
    %v106 = vsel %vm104, %v103, %v101
    %v107 = vmul.f32 %v105, %v61
    %v108 = vmul.f32 %v106, %v62
    %v109 = vadd.f32 %v98, %v107
    %v110 = vadd.f32 %v99, %v108
    %111 = vrot.lane.b32.xlu0 %v83, 112
    %v112 = vpop.permute.xlu0 %111
    %113 = vrot.lane.b32.xlu0 %v84, 112
    %v114 = vpop.permute.xlu0 %113
    %vm115 = vcmp.lt.s32.totalorder %v92, 112
    %v116 = vsel %vm115, %v112, %v114
    %v117 = vsel %vm115, %v114, %v112
    %v118 = vmul.f32 %v116, %v64
    %v119 = vmul.f32 %v117, %v65
    %v120 = vadd.f32 %v109, %v118
    %v121 = vadd.f32 %v110, %v119
    %122 = vrot.lane.b32.xlu0 %v83, 111
    %v123 = vpop.permute.xlu0 %122
    %124 = vrot.lane.b32.xlu0 %v84, 111
    %v125 = vpop.permute.xlu0 %124
    %vm126 = vcmp.lt.s32.totalorder %v92, 111
    %v127 = vsel %vm126, %v123, %v125
    %v128 = vsel %vm126, %v125, %v123
    %v129 = vmul.f32 %v127, %v67
    %v130 = vmul.f32 %v128, %v68
    %v131 = vadd.f32 %v120, %v129
    %v132 = vadd.f32 %v121, %v130
    %133 = vrot.lane.b32.xlu0 %v83, 110
    %v134 = vpop.permute.xlu0 %133
    %135 = vrot.lane.b32.xlu0 %v84, 110
    %v136 = vpop.permute.xlu0 %135
    %vm137 = vcmp.lt.s32.totalorder %v92, 110
    %v138 = vsel %vm137, %v134, %v136
    %v139 = vsel %vm137, %v136, %v134
    %v140 = vmul.f32 %v138, %v70
    %v141 = vmul.f32 %v139, %v71
    %v142 = vadd.f32 %v131, %v140
    %v143 = vadd.f32 %v132, %v141
    %144 = vrot.lane.b32.xlu0 %v83, 96
    %v145 = vpop.permute.xlu0 %144
    %146 = vrot.lane.b32.xlu0 %v84, 96
    %v147 = vpop.permute.xlu0 %146
    %vm148 = vcmp.lt.s32.totalorder %v92, 96
    %v149 = vsel %vm148, %v145, %v147
    %v150 = vsel %vm148, %v147, %v145
    %v151 = vmul.f32 %v149, %v73
    %v152 = vmul.f32 %v150, %v74
    %v153 = vadd.f32 %v142, %v151
    %v154 = vadd.f32 %v143, %v152
    %155 = vrot.lane.b32.xlu0 %v83, 95
    %v156 = vpop.permute.xlu0 %155
    %157 = vrot.lane.b32.xlu0 %v84, 95
    %v158 = vpop.permute.xlu0 %157
    %vm159 = vcmp.lt.s32.totalorder %v92, 95
    %v160 = vsel %vm159, %v156, %v158
    %v161 = vsel %vm159, %v158, %v156
    %v162 = vmul.f32 %v160, %v76
    %v163 = vmul.f32 %v161, %v77
    %v164 = vadd.f32 %v153, %v162
    %v165 = vadd.f32 %v154, %v163
    %166 = vrot.lane.b32.xlu0 %v83, 94
    %v167 = vpop.permute.xlu0 %166
    %168 = vrot.lane.b32.xlu0 %v84, 94
    %v169 = vpop.permute.xlu0 %168
    %vm170 = vcmp.lt.s32.totalorder %v92, 94
    %v171 = vsel %vm170, %v167, %v169
    %v172 = vsel %vm170, %v169, %v167
    %v173 = vmul.f32 %v171, %v79
    %v174 = vmul.f32 %v172, %v80
    %v175 = vadd.f32 %v164, %v173
    %v176 = vadd.f32 %v165, %v174
    %v177 = vmul.f32 %v175, 0.1
    %v178 = vmul.f32 %v176, 0.1
    %v179 = vmax.f32 %v177, -0.05
    %v180 = vmax.f32 %v178, -0.05
    %v181 = vmin.f32 %v179, 0.05
    %v182 = vmin.f32 %v180, 0.05
    %v183 = vsub.f32 %v177, %v181
    %v184 = vsub.f32 %v178, %v182
    %v185 = vmul.f32 %v81, %v183
    %v186 = vmul.f32 %v82, %v184
    %v187 = vmul.f32 %v185, %v55
    %v188 = vmul.f32 %v186, %v56
    %189 = vrot.lane.b32.xlu0 %v185, 1
    %v190 = vpop.permute.xlu0 %189
    %191 = vrot.lane.b32.xlu0 %v186, 1
    %v192 = vpop.permute.xlu0 %191
    %vm193 = vcmp.lt.s32.totalorder %v92, 1
    %v194 = vsel %vm193, %v190, %v192
    %v195 = vsel %vm193, %v192, %v190
    %v196 = vmul.f32 %v195, %v58
    %v197 = vmul.f32 %v194, %v59
    %v198 = vadd.f32 %v187, %v196
    %v199 = vadd.f32 %v188, %v197
    %200 = vrot.lane.b32.xlu0 %v185, 2
    %v201 = vpop.permute.xlu0 %200
    %202 = vrot.lane.b32.xlu0 %v186, 2
    %v203 = vpop.permute.xlu0 %202
    %vm204 = vcmp.lt.s32.totalorder %v92, 2
    %v205 = vsel %vm204, %v201, %v203
    %v206 = vsel %vm204, %v203, %v201
    %v207 = vmul.f32 %v206, %v61
    %v208 = vmul.f32 %v205, %v62
    %v209 = vadd.f32 %v198, %v207
    %v210 = vadd.f32 %v199, %v208
    %211 = vrot.lane.b32.xlu0 %v185, 16
    %v212 = vpop.permute.xlu0 %211
    %213 = vrot.lane.b32.xlu0 %v186, 16
    %v214 = vpop.permute.xlu0 %213
    %vm215 = vcmp.lt.s32.totalorder %v92, 16
    %v216 = vsel %vm215, %v212, %v214
    %v217 = vsel %vm215, %v214, %v212
    %v218 = vmul.f32 %v217, %v64
    %v219 = vmul.f32 %v216, %v65
    %v220 = vadd.f32 %v209, %v218
    %v221 = vadd.f32 %v210, %v219
    %222 = vrot.lane.b32.xlu0 %v185, 17
    %v223 = vpop.permute.xlu0 %222
    %224 = vrot.lane.b32.xlu0 %v186, 17
    %v225 = vpop.permute.xlu0 %224
    %vm226 = vcmp.lt.s32.totalorder %v92, 17
    %v227 = vsel %vm226, %v223, %v225
    %v228 = vsel %vm226, %v225, %v223
    %v229 = vmul.f32 %v228, %v67
    %v230 = vmul.f32 %v227, %v68
    %v231 = vadd.f32 %v220, %v229
    %v232 = vadd.f32 %v221, %v230
    %233 = vrot.lane.b32.xlu0 %v185, 18
    %v234 = vpop.permute.xlu0 %233
    %235 = vrot.lane.b32.xlu0 %v186, 18
    %v236 = vpop.permute.xlu0 %235
    %vm237 = vcmp.lt.s32.totalorder %v92, 18
    %v238 = vsel %vm237, %v234, %v236
    %v239 = vsel %vm237, %v236, %v234
    %v240 = vmul.f32 %v239, %v70
    %v241 = vmul.f32 %v238, %v71
    %v242 = vadd.f32 %v231, %v240
    %v243 = vadd.f32 %v232, %v241
    %244 = vrot.lane.b32.xlu0 %v185, 32
    %v245 = vpop.permute.xlu0 %244
    %246 = vrot.lane.b32.xlu0 %v186, 32
    %v247 = vpop.permute.xlu0 %246
    %vm248 = vcmp.lt.s32.totalorder %v92, 32
    %v249 = vsel %vm248, %v245, %v247
    %v250 = vsel %vm248, %v247, %v245
    %v251 = vmul.f32 %v250, %v73
    %v252 = vmul.f32 %v249, %v74
    %v253 = vadd.f32 %v242, %v251
    %v254 = vadd.f32 %v243, %v252
    %255 = vrot.lane.b32.xlu0 %v185, 33
    %v256 = vpop.permute.xlu0 %255
    %257 = vrot.lane.b32.xlu0 %v186, 33
    %v258 = vpop.permute.xlu0 %257
    %vm259 = vcmp.lt.s32.totalorder %v92, 33
    %v260 = vsel %vm259, %v256, %v258
    %v261 = vsel %vm259, %v258, %v256
    %v262 = vmul.f32 %v261, %v76
    %v263 = vmul.f32 %v260, %v77
    %v264 = vadd.f32 %v253, %v262
    %v265 = vadd.f32 %v254, %v263
    %266 = vrot.lane.b32.xlu0 %v185, 34
    %v267 = vpop.permute.xlu0 %266
    %268 = vrot.lane.b32.xlu0 %v186, 34
    %v269 = vpop.permute.xlu0 %268
    %vm270 = vcmp.lt.s32.totalorder %v92, 34
    %v271 = vsel %vm270, %v267, %v269
    %v272 = vsel %vm270, %v269, %v267
    %v273 = vmul.f32 %v272, %v79
    %v274 = vmul.f32 %v271, %v80
    %v275 = vadd.f32 %v264, %v273
    %v276 = vadd.f32 %v265, %v274
    %v279 = vrot.slane %v275, 2
    %v280 = vrot.slane %v276, 2
    %v283 = vadd.f32 %v275, %v279
    %v284 = vadd.f32 %v276, %v280
    %v285 = vrot.slane %v275, 4
    %v286 = vrot.slane %v276, 4
    %v289 = vadd.f32 %v283, %v285
    %v290 = vadd.f32 %v284, %v286
    %v291 = vrot.slane %v275, 6
    %v292 = vrot.slane %v276, 6
    %v295 = vadd.f32 %v289, %v291
    %v296 = vadd.f32 %v290, %v292
    %v297 = vsub.f32 %v295, %v83
    %v298 = vsub.f32 %v296, %v84
    %v301 = vrot.slane %v297, 6
    %v302 = vrot.slane %v298, 6
    %v305 = vrot.slane %v297, 4
    %v306 = vrot.slane %v298, 4
    %v309 = vrot.slane %v297, 2
    %v310 = vrot.slane %v298, 2
    %vm313 = vcmask 1041408
    %v314 = vsel %vm313, %v297, %v301
    %v315 = vsel %vm313, %v298, %v302
    %vm316 = vcmask 1043456
    %v317 = vsel %vm316, %v314, %v305
    %v318 = vsel %vm316, %v315, %v306
    %vm319 = vcmask 1045504
    %v320 = vsel %vm319, %v317, %v309
    %v321 = vsel %vm319, %v318, %v310
    %v322 = vmul.f32 %v320, %v55
    %v323 = vmul.f32 %v321, %v56
    %324 = vrot.lane.b32.xlu0 %v320, 127
    %v325 = vpop.permute.xlu0 %324
    %326 = vrot.lane.b32.xlu0 %v321, 127
    %v327 = vpop.permute.xlu0 %326
    %v328 = vsel %vm93, %v325, %v327
    %v329 = vsel %vm93, %v327, %v325
    %v330 = vmul.f32 %v328, %v58
    %v331 = vmul.f32 %v329, %v59
    %v332 = vadd.f32 %v322, %v330
    %v333 = vadd.f32 %v323, %v331
    %334 = vrot.lane.b32.xlu0 %v320, 126
    %v335 = vpop.permute.xlu0 %334
    %336 = vrot.lane.b32.xlu0 %v321, 126
    %v337 = vpop.permute.xlu0 %336
    %v338 = vsel %vm104, %v335, %v337
    %v339 = vsel %vm104, %v337, %v335
    %v340 = vmul.f32 %v338, %v61
    %v341 = vmul.f32 %v339, %v62
    %v342 = vadd.f32 %v332, %v340
    %v343 = vadd.f32 %v333, %v341
    %344 = vrot.lane.b32.xlu0 %v320, 112
    %v345 = vpop.permute.xlu0 %344
    %346 = vrot.lane.b32.xlu0 %v321, 112
    %v347 = vpop.permute.xlu0 %346
    %v348 = vsel %vm115, %v345, %v347
    %v349 = vsel %vm115, %v347, %v345
    %v350 = vmul.f32 %v348, %v64
    %v351 = vmul.f32 %v349, %v65
    %v352 = vadd.f32 %v342, %v350
    %v353 = vadd.f32 %v343, %v351
    %354 = vrot.lane.b32.xlu0 %v320, 111
    %v355 = vpop.permute.xlu0 %354
    %356 = vrot.lane.b32.xlu0 %v321, 111
    %v357 = vpop.permute.xlu0 %356
    %v358 = vsel %vm126, %v355, %v357
    %v359 = vsel %vm126, %v357, %v355
    %v360 = vmul.f32 %v358, %v67
    %v361 = vmul.f32 %v359, %v68
    %v362 = vadd.f32 %v352, %v360
    %v363 = vadd.f32 %v353, %v361
    %364 = vrot.lane.b32.xlu0 %v320, 110
    %v365 = vpop.permute.xlu0 %364
    %366 = vrot.lane.b32.xlu0 %v321, 110
    %v367 = vpop.permute.xlu0 %366
    %v368 = vsel %vm137, %v365, %v367
    %v369 = vsel %vm137, %v367, %v365
    %v370 = vmul.f32 %v368, %v70
    %v371 = vmul.f32 %v369, %v71
    %v372 = vadd.f32 %v362, %v370
    %v373 = vadd.f32 %v363, %v371
    %374 = vrot.lane.b32.xlu0 %v320, 96
    %v375 = vpop.permute.xlu0 %374
    %376 = vrot.lane.b32.xlu0 %v321, 96
    %v377 = vpop.permute.xlu0 %376
    %v378 = vsel %vm148, %v375, %v377
    %v379 = vsel %vm148, %v377, %v375
    %v380 = vmul.f32 %v378, %v73
    %v381 = vmul.f32 %v379, %v74
    %v382 = vadd.f32 %v372, %v380
    %v383 = vadd.f32 %v373, %v381
    %384 = vrot.lane.b32.xlu0 %v320, 95
    %v385 = vpop.permute.xlu0 %384
    %386 = vrot.lane.b32.xlu0 %v321, 95
    %v387 = vpop.permute.xlu0 %386
    %v388 = vsel %vm159, %v385, %v387
    %v389 = vsel %vm159, %v387, %v385
    %v390 = vmul.f32 %v388, %v76
    %v391 = vmul.f32 %v389, %v77
    %v392 = vadd.f32 %v382, %v390
    %v393 = vadd.f32 %v383, %v391
    %394 = vrot.lane.b32.xlu0 %v320, 94
    %v395 = vpop.permute.xlu0 %394
    %396 = vrot.lane.b32.xlu0 %v321, 94
    %v397 = vpop.permute.xlu0 %396
    %v398 = vsel %vm170, %v395, %v397
    %v399 = vsel %vm170, %v397, %v395
    %v400 = vmul.f32 %v398, %v79
    %v401 = vmul.f32 %v399, %v80
    %v402 = vadd.f32 %v392, %v400
    %v403 = vadd.f32 %v393, %v401
    %v404 = vmul.f32 %v402, 0.1
    %v405 = vmul.f32 %v403, 0.1
    %v406 = vsub.f32 %v185, %v404
    %v407 = vsub.f32 %v186, %v405
    %v408 = vmax.f32 %v406, -0.05
    %v409 = vmax.f32 %v407, -0.05
    %v410 = vmin.f32 %v408, 0.05
    %v411 = vmin.f32 %v409, 0.05
    %v412 = vsub.f32 %v406, %v410
    %v413 = vsub.f32 %v407, %v411
    %v414 = vmul.f32 %v81, %v412
    %v415 = vmul.f32 %v82, %v413
    %v416 = vmul.f32 %v414, %v55
    %v417 = vmul.f32 %v415, %v56
    %418 = vrot.lane.b32.xlu0 %v414, 1
    %v419 = vpop.permute.xlu0 %418
    %420 = vrot.lane.b32.xlu0 %v415, 1
    %v421 = vpop.permute.xlu0 %420
    %v422 = vsel %vm193, %v419, %v421
    %v423 = vsel %vm193, %v421, %v419
    %v424 = vmul.f32 %v423, %v58
    %v425 = vmul.f32 %v422, %v59
    %v426 = vadd.f32 %v416, %v424
    %v427 = vadd.f32 %v417, %v425
    %428 = vrot.lane.b32.xlu0 %v414, 2
    %v429 = vpop.permute.xlu0 %428
    %430 = vrot.lane.b32.xlu0 %v415, 2
    %v431 = vpop.permute.xlu0 %430
    %v432 = vsel %vm204, %v429, %v431
    %v433 = vsel %vm204, %v431, %v429
    %v434 = vmul.f32 %v433, %v61
    %v435 = vmul.f32 %v432, %v62
    %v436 = vadd.f32 %v426, %v434
    %v437 = vadd.f32 %v427, %v435
    %438 = vrot.lane.b32.xlu0 %v414, 16
    %v439 = vpop.permute.xlu0 %438
    %440 = vrot.lane.b32.xlu0 %v415, 16
    %v441 = vpop.permute.xlu0 %440
    %v442 = vsel %vm215, %v439, %v441
    %v443 = vsel %vm215, %v441, %v439
    %v444 = vmul.f32 %v443, %v64
    %v445 = vmul.f32 %v442, %v65
    %v446 = vadd.f32 %v436, %v444
    %v447 = vadd.f32 %v437, %v445
    %448 = vrot.lane.b32.xlu0 %v414, 17
    %v449 = vpop.permute.xlu0 %448
    %450 = vrot.lane.b32.xlu0 %v415, 17
    %v451 = vpop.permute.xlu0 %450
    %v452 = vsel %vm226, %v449, %v451
    %v453 = vsel %vm226, %v451, %v449
    %v454 = vmul.f32 %v453, %v67
    %v455 = vmul.f32 %v452, %v68
    %v456 = vadd.f32 %v446, %v454
    %v457 = vadd.f32 %v447, %v455
    %458 = vrot.lane.b32.xlu0 %v414, 18
    %v459 = vpop.permute.xlu0 %458
    %460 = vrot.lane.b32.xlu0 %v415, 18
    %v461 = vpop.permute.xlu0 %460
    %v462 = vsel %vm237, %v459, %v461
    %v463 = vsel %vm237, %v461, %v459
    %v464 = vmul.f32 %v463, %v70
    %v465 = vmul.f32 %v462, %v71
    %v466 = vadd.f32 %v456, %v464
    %v467 = vadd.f32 %v457, %v465
    %468 = vrot.lane.b32.xlu0 %v414, 32
    %v469 = vpop.permute.xlu0 %468
    %470 = vrot.lane.b32.xlu0 %v415, 32
    %v471 = vpop.permute.xlu0 %470
    %v472 = vsel %vm248, %v469, %v471
    %v473 = vsel %vm248, %v471, %v469
    %v474 = vmul.f32 %v473, %v73
    %v475 = vmul.f32 %v472, %v74
    %v476 = vadd.f32 %v466, %v474
    %v477 = vadd.f32 %v467, %v475
    %478 = vrot.lane.b32.xlu0 %v414, 33
    %v479 = vpop.permute.xlu0 %478
    %480 = vrot.lane.b32.xlu0 %v415, 33
    %v481 = vpop.permute.xlu0 %480
    %v482 = vsel %vm259, %v479, %v481
    %v483 = vsel %vm259, %v481, %v479
    %v484 = vmul.f32 %v483, %v76
    %v485 = vmul.f32 %v482, %v77
    %v486 = vadd.f32 %v476, %v484
    %v487 = vadd.f32 %v477, %v485
    %488 = vrot.lane.b32.xlu0 %v414, 34
    %v489 = vpop.permute.xlu0 %488
    %490 = vrot.lane.b32.xlu0 %v415, 34
    %v491 = vpop.permute.xlu0 %490
    %v492 = vsel %vm270, %v489, %v491
    %v493 = vsel %vm270, %v491, %v489
    %v494 = vmul.f32 %v493, %v79
    %v495 = vmul.f32 %v492, %v80
    %v496 = vadd.f32 %v486, %v494
    %v497 = vadd.f32 %v487, %v495
    %v500 = vrot.slane %v496, 2
    %v501 = vrot.slane %v497, 2
    %v504 = vadd.f32 %v496, %v500
    %v505 = vadd.f32 %v497, %v501
    %v506 = vrot.slane %v496, 4
    %v507 = vrot.slane %v497, 4
    %v510 = vadd.f32 %v504, %v506
    %v511 = vadd.f32 %v505, %v507
    %v512 = vrot.slane %v496, 6
    %v513 = vrot.slane %v497, 6
    %v516 = vadd.f32 %v510, %v512
    %v517 = vadd.f32 %v511, %v513
    %v518 = vsub.f32 %v516, %v83
    %v519 = vsub.f32 %v517, %v84
    %v522 = vrot.slane %v518, 6
    %v523 = vrot.slane %v519, 6
    %v526 = vrot.slane %v518, 4
    %v527 = vrot.slane %v519, 4
    %v530 = vrot.slane %v518, 2
    %v531 = vrot.slane %v519, 2
    %v534 = vsel %vm313, %v518, %v522
    %v535 = vsel %vm313, %v519, %v523
    %v536 = vsel %vm316, %v534, %v526
    %v537 = vsel %vm316, %v535, %v527
    %v538 = vsel %vm319, %v536, %v530
    %v539 = vsel %vm319, %v537, %v531
    %v540 = vmul.f32 %v538, %v55
    %v541 = vmul.f32 %v539, %v56
    %542 = vrot.lane.b32.xlu0 %v538, 127
    %v543 = vpop.permute.xlu0 %542
    %544 = vrot.lane.b32.xlu0 %v539, 127
    %v545 = vpop.permute.xlu0 %544
    %v546 = vsel %vm93, %v543, %v545
    %v547 = vsel %vm93, %v545, %v543
    %v548 = vmul.f32 %v546, %v58
    %v549 = vmul.f32 %v547, %v59
    %v550 = vadd.f32 %v540, %v548
    %v551 = vadd.f32 %v541, %v549
    %552 = vrot.lane.b32.xlu0 %v538, 126
    %v553 = vpop.permute.xlu0 %552
    %554 = vrot.lane.b32.xlu0 %v539, 126
    %v555 = vpop.permute.xlu0 %554
    %v556 = vsel %vm104, %v553, %v555
    %v557 = vsel %vm104, %v555, %v553
    %v558 = vmul.f32 %v556, %v61
    %v559 = vmul.f32 %v557, %v62
    %v560 = vadd.f32 %v550, %v558
    %v561 = vadd.f32 %v551, %v559
    %562 = vrot.lane.b32.xlu0 %v538, 112
    %v563 = vpop.permute.xlu0 %562
    %564 = vrot.lane.b32.xlu0 %v539, 112
    %v565 = vpop.permute.xlu0 %564
    %v566 = vsel %vm115, %v563, %v565
    %v567 = vsel %vm115, %v565, %v563
    %v568 = vmul.f32 %v566, %v64
    %v569 = vmul.f32 %v567, %v65
    %v570 = vadd.f32 %v560, %v568
    %v571 = vadd.f32 %v561, %v569
    %572 = vrot.lane.b32.xlu0 %v538, 111
    %v573 = vpop.permute.xlu0 %572
    %574 = vrot.lane.b32.xlu0 %v539, 111
    %v575 = vpop.permute.xlu0 %574
    %v576 = vsel %vm126, %v573, %v575
    %v577 = vsel %vm126, %v575, %v573
    %v578 = vmul.f32 %v576, %v67
    %v579 = vmul.f32 %v577, %v68
    %v580 = vadd.f32 %v570, %v578
    %v581 = vadd.f32 %v571, %v579
    %582 = vrot.lane.b32.xlu0 %v538, 110
    %v583 = vpop.permute.xlu0 %582
    %584 = vrot.lane.b32.xlu0 %v539, 110
    %v585 = vpop.permute.xlu0 %584
    %v586 = vsel %vm137, %v583, %v585
    %v587 = vsel %vm137, %v585, %v583
    %v588 = vmul.f32 %v586, %v70
    %v589 = vmul.f32 %v587, %v71
    %v590 = vadd.f32 %v580, %v588
    %v591 = vadd.f32 %v581, %v589
    %592 = vrot.lane.b32.xlu0 %v538, 96
    %v593 = vpop.permute.xlu0 %592
    %594 = vrot.lane.b32.xlu0 %v539, 96
    %v595 = vpop.permute.xlu0 %594
    %v596 = vsel %vm148, %v593, %v595
    %v597 = vsel %vm148, %v595, %v593
    %v598 = vmul.f32 %v596, %v73
    %v599 = vmul.f32 %v597, %v74
    %v600 = vadd.f32 %v590, %v598
    %v601 = vadd.f32 %v591, %v599
    %602 = vrot.lane.b32.xlu0 %v538, 95
    %v603 = vpop.permute.xlu0 %602
    %604 = vrot.lane.b32.xlu0 %v539, 95
    %v605 = vpop.permute.xlu0 %604
    %v606 = vsel %vm159, %v603, %v605
    %v607 = vsel %vm159, %v605, %v603
    %v608 = vmul.f32 %v606, %v76
    %v609 = vmul.f32 %v607, %v77
    %v610 = vadd.f32 %v600, %v608
    %v611 = vadd.f32 %v601, %v609
    %612 = vrot.lane.b32.xlu0 %v538, 94
    %v613 = vpop.permute.xlu0 %612
    %614 = vrot.lane.b32.xlu0 %v539, 94
    %v615 = vpop.permute.xlu0 %614
    %v616 = vsel %vm170, %v613, %v615
    %v617 = vsel %vm170, %v615, %v613
    %v618 = vmul.f32 %v616, %v79
    %v619 = vmul.f32 %v617, %v80
    %v620 = vadd.f32 %v610, %v618
    %v621 = vadd.f32 %v611, %v619
    %v622 = vmul.f32 %v620, 0.1
    %v623 = vmul.f32 %v621, 0.1
    %v624 = vsub.f32 %v414, %v622
    %v625 = vsub.f32 %v415, %v623
    %v626 = vmax.f32 %v624, -0.05
    %v627 = vmax.f32 %v625, -0.05
    %v628 = vmin.f32 %v626, 0.05
    %v629 = vmin.f32 %v627, 0.05
    %v630 = vsub.f32 %v624, %v628
    %v631 = vsub.f32 %v625, %v629
    %v632 = vmul.f32 %v81, %v630
    %v633 = vmul.f32 %v82, %v631
    %v634 = vmul.f32 %v632, %v55
    %v635 = vmul.f32 %v633, %v56
    %636 = vrot.lane.b32.xlu0 %v632, 1
    %v637 = vpop.permute.xlu0 %636
    %638 = vrot.lane.b32.xlu0 %v633, 1
    %v639 = vpop.permute.xlu0 %638
    %v640 = vsel %vm193, %v637, %v639
    %v641 = vsel %vm193, %v639, %v637
    %v642 = vmul.f32 %v641, %v58
    %v643 = vmul.f32 %v640, %v59
    %v644 = vadd.f32 %v634, %v642
    %v645 = vadd.f32 %v635, %v643
    %646 = vrot.lane.b32.xlu0 %v632, 2
    %v647 = vpop.permute.xlu0 %646
    %648 = vrot.lane.b32.xlu0 %v633, 2
    %v649 = vpop.permute.xlu0 %648
    %v650 = vsel %vm204, %v647, %v649
    %v651 = vsel %vm204, %v649, %v647
    %v652 = vmul.f32 %v651, %v61
    %v653 = vmul.f32 %v650, %v62
    %v654 = vadd.f32 %v644, %v652
    %v655 = vadd.f32 %v645, %v653
    %656 = vrot.lane.b32.xlu0 %v632, 16
    %v657 = vpop.permute.xlu0 %656
    %658 = vrot.lane.b32.xlu0 %v633, 16
    %v659 = vpop.permute.xlu0 %658
    %v660 = vsel %vm215, %v657, %v659
    %v661 = vsel %vm215, %v659, %v657
    %v662 = vmul.f32 %v661, %v64
    %v663 = vmul.f32 %v660, %v65
    %v664 = vadd.f32 %v654, %v662
    %v665 = vadd.f32 %v655, %v663
    %666 = vrot.lane.b32.xlu0 %v632, 17
    %v667 = vpop.permute.xlu0 %666
    %668 = vrot.lane.b32.xlu0 %v633, 17
    %v669 = vpop.permute.xlu0 %668
    %v670 = vsel %vm226, %v667, %v669
    %v671 = vsel %vm226, %v669, %v667
    %v672 = vmul.f32 %v671, %v67
    %v673 = vmul.f32 %v670, %v68
    %v674 = vadd.f32 %v664, %v672
    %v675 = vadd.f32 %v665, %v673
    %676 = vrot.lane.b32.xlu0 %v632, 18
    %v677 = vpop.permute.xlu0 %676
    %678 = vrot.lane.b32.xlu0 %v633, 18
    %v679 = vpop.permute.xlu0 %678
    %v680 = vsel %vm237, %v677, %v679
    %v681 = vsel %vm237, %v679, %v677
    %v682 = vmul.f32 %v681, %v70
    %v683 = vmul.f32 %v680, %v71
    %v684 = vadd.f32 %v674, %v682
    %v685 = vadd.f32 %v675, %v683
    %686 = vrot.lane.b32.xlu0 %v632, 32
    %v687 = vpop.permute.xlu0 %686
    %688 = vrot.lane.b32.xlu0 %v633, 32
    %v689 = vpop.permute.xlu0 %688
    %v690 = vsel %vm248, %v687, %v689
    %v691 = vsel %vm248, %v689, %v687
    %v692 = vmul.f32 %v691, %v73
    %v693 = vmul.f32 %v690, %v74
    %v694 = vadd.f32 %v684, %v692
    %v695 = vadd.f32 %v685, %v693
    %696 = vrot.lane.b32.xlu0 %v632, 33
    %v697 = vpop.permute.xlu0 %696
    %698 = vrot.lane.b32.xlu0 %v633, 33
    %v699 = vpop.permute.xlu0 %698
    %v700 = vsel %vm259, %v697, %v699
    %v701 = vsel %vm259, %v699, %v697
    %v702 = vmul.f32 %v701, %v76
    %v703 = vmul.f32 %v700, %v77
    %v704 = vadd.f32 %v694, %v702
    %v705 = vadd.f32 %v695, %v703
    %706 = vrot.lane.b32.xlu0 %v632, 34
    %v707 = vpop.permute.xlu0 %706
    %708 = vrot.lane.b32.xlu0 %v633, 34
    %v709 = vpop.permute.xlu0 %708
    %v710 = vsel %vm270, %v707, %v709
    %v711 = vsel %vm270, %v709, %v707
    %v712 = vmul.f32 %v711, %v79
    %v713 = vmul.f32 %v710, %v80
    %v714 = vadd.f32 %v704, %v712
    %v715 = vadd.f32 %v705, %v713
    %v718 = vrot.slane %v714, 2
    %v719 = vrot.slane %v715, 2
    %v722 = vadd.f32 %v714, %v718
    %v723 = vadd.f32 %v715, %v719
    %v724 = vrot.slane %v714, 4
    %v725 = vrot.slane %v715, 4
    %v728 = vadd.f32 %v722, %v724
    %v729 = vadd.f32 %v723, %v725
    %v730 = vrot.slane %v714, 6
    %v731 = vrot.slane %v715, 6
    %v734 = vadd.f32 %v728, %v730
    %v735 = vadd.f32 %v729, %v731
    %v738 = vcombine.low %v734, %v735
    %v740 = vunpack.c.l.s4 1983009808
    %v741 = vunpack.c.0.s8 %v740
    %v742 = vlaneseq
    %v743 = vshrl.u32 %v742, 7
    %v744 = vsub.s32 %v741, %v743
    %v745 = vrot.slane %v738, %v744
    %747 = vst [vmem:[#allocation8] sm:$0xf] %v745
    %748 = vst [vmem:[#allocation9] sm:$0xff] %v632
    %749 = vst [vmem:[#allocation9 + $0x8] sm:$0xff] %v633
    // Predicated region
    $region26: #{tpu_custom_call.1} parent=1 // pred_check
      _
    $region27: #{tpu_custom_call.1} parent=1 // pred_check_branch
      %751 = sbr.rel (0) target = $region29
    $region28: #{tpu_custom_call.1} parent=1 // pred_region
      %s753 = ssub.s32 64, 64
      %754 = vsyncadd [#allocation4], %s753
      %s756 = sshll.u32 [#allocation8], 4
      %s757 = int_to_ptr.vmem [resolvable:$true] %s756
      %759 = dma.vmem_to_hbm [thread:$0]  %s757, 64, %s3, [#allocation4]
    $region29: #{tpu_custom_call.1} parent=1 // pred_fallthru
      _
    // Predicated region
    $region30: #{tpu_custom_call.1} parent=1 // pred_check
      _
    $region31: #{tpu_custom_call.1} parent=1 // pred_check_branch
      %761 = sbr.rel (0) target = $region33
    $region32: #{tpu_custom_call.1} parent=1 // pred_region
      %s763 = ssub.s32 256, 256
      %764 = vsyncadd [#allocation10], %s763
      %s766 = sshll.u32 [#allocation9], 4
      %s767 = int_to_ptr.vmem [resolvable:$true] %s766
      %769 = dma.vmem_to_hbm [thread:$0]  %s767, 256, %s4, [#allocation10]
    $region33: #{tpu_custom_call.1} parent=1 // pred_fallthru
      _
    // Predicated region
    $region34: #{tpu_custom_call.1} parent=1 // pred_check
      _
    $region35: #{tpu_custom_call.1} parent=1 // pred_check_branch
      %771 = sbr.rel (0) target = $region37
    $region36: #{tpu_custom_call.1} parent=1 // pred_region
      %772 = dma.done [#allocation4], 64
    $region37: #{tpu_custom_call.1} parent=1 // pred_fallthru
      _
    // Predicated region
    $region38: #{tpu_custom_call.1} parent=1 // pred_check
      _
    $region39: #{tpu_custom_call.1} parent=1 // pred_check_branch
      %774 = sbr.rel (0) target = $region41
    $region40: #{tpu_custom_call.1} parent=1 // pred_region
      %775 = dma.done [#allocation10], 256
    $region41: #{tpu_custom_call.1} parent=1 // pred_fallthru
      _
    %776 = vsyncpa [#allocation3], 1
    %777 = vsyncpa [#allocation6], 1
    %778 = vsyncpa [#allocation4], 1
    %779 = vsyncpa [#allocation10], 1

</llo_original>
